<compile_context>
chip_gen: v7x
topology: tpu7x:2x2x1
jax: 0.10.0
libtpu: 0.0.40
codegen_flags: <defaults>
</compile_context>

<pallas_src>
import functools

import jax
import jax.numpy as jnp
import numpy as np
from jax.experimental import pallas as pl
from jax.experimental.pallas import tpu as pltpu


def _convdw_kernel(x_ref, wdw_ref, wpw_ref, b1_ref, b2_ref, o_ref, xpad_ref, *,
                   stride, padding, ho, wo):
    """One batch element per grid step, channels-first layout.

    x_ref   : (1, Cin, H, W)     raw (unpadded) NCHW input tile
    wdw_ref : (Cin, 3, 3)        depthwise weights, BN1 scale folded in
    wpw_ref : (Cout, Cin, 1)     pointwise weights, BN2 scale folded in
    b1_ref  : (Cin, 1, 1)        folded BN1 shift
    b2_ref  : (Cout, 1, 1)       folded BN2 shift
    o_ref   : (1, Cout, Ho, Wo)  NCHW output tile
    xpad_ref: (Cin, Hp, Wp)      VMEM scratch for the zero-padded input
    """
    cin = x_ref.shape[1]
    h = x_ref.shape[2]
    w = x_ref.shape[3]

    # Build the zero-padded input in VMEM (replaces a wrapper jnp.pad that
    # read and rewrote the whole input in HBM before the kernel).
    xpad_ref[...] = jnp.zeros_like(xpad_ref)
    xpad_ref[:, padding:padding + h, padding:padding + w] = (
        x_ref[0].astype(jnp.float32))
    xp = xpad_ref[...]                                   # (Cin, Hp, Wp)

    wdw = wdw_ref[...]                                   # (Cin, 3, 3)

    # Depthwise 3x3: 9 shifted (and strided) windows, accumulated on the VPU.
    # Accumulator is initialized from the first tap (no zeros + add).
    acc = None
    for kh in range(3):
        for kw in range(3):
            win = jax.lax.slice(
                xp,
                (0, kh, kw),
                (cin, kh + (ho - 1) * stride + 1, kw + (wo - 1) * stride + 1),
                (1, stride, stride))                     # (Cin, Ho, Wo)
            term = win * wdw[:, kh:kh + 1, kw:kw + 1]    # per-channel scale
            acc = term if acc is None else acc + term

    # BN1 shift (scale already folded into wdw) + ReLU.
    hdw = jnp.maximum(acc + b1_ref[...], 0.0)            # (Cin, Ho, Wo)

    # Pointwise 1x1 conv as a VPU broadcast-MAC over input channels.
    wpw = wpw_ref[...]                                   # (Cout, Cin, 1)
    out = None
    for c in range(cin):
        term = wpw[:, c:c + 1, :] * hdw[c:c + 1]         # (Cout,1,1)*(1,Ho,Wo)
        out = term if out is None else out + term        # (Cout, Ho, Wo)

    # BN2 shift (scale folded into wpw) + ReLU, stored natively in NCHW.
    o_ref[0] = jnp.maximum(out + b2_ref[...], 0.0).astype(o_ref.dtype)


def conv_dw_pallas(x_nchw, w_dw, w_pw, bn1, bn2, *, stride, padding=1,
                   eps=1e-5):
    """x_nchw: (N,Cin,H,W); w_dw: (Cin,1,3,3); w_pw: (Cout,Cin,1,1).

    bn1 / bn2 are (gamma, beta, running_mean, running_var) tuples (eval mode).
    Returns NCHW output, matching the PyTorch module.
    """
    n, cin, h, w = x_nchw.shape
    cout = w_pw.shape[0]
    ho = (h + 2 * padding - 3) // stride + 1
    wo = (w + 2 * padding - 3) // stride + 1
    hp, wp = h + 2 * padding, w + 2 * padding

    # Fold BN scales into the conv weights; only the shifts enter the kernel.
    def fold(bn):
        g, b, m, v = bn
        s = (g / jnp.sqrt(v + eps)).astype(jnp.float32)
        return s, (b - m * s).astype(jnp.float32)

    s1, b1 = fold(bn1)                                            # (Cin,)
    s2, b2 = fold(bn2)                                            # (Cout,)

    wdw = w_dw[:, 0].astype(jnp.float32) * s1[:, None, None]      # (Cin,3,3)
    wpw = (w_pw[:, :, 0, 0].astype(jnp.float32)
           * s2[:, None])[..., None]                              # (Cout,Cin,1)
    b1 = b1.reshape(cin, 1, 1)
    b2 = b2.reshape(cout, 1, 1)

    kernel = functools.partial(_convdw_kernel, stride=stride, padding=padding,
                               ho=ho, wo=wo)
    out = pl.pallas_call(
        kernel,
        out_shape=jax.ShapeDtypeStruct((n, cout, ho, wo), x_nchw.dtype),
        grid_spec=pltpu.PrefetchScalarGridSpec(
            num_scalar_prefetch=0,
            grid=(n,),
            in_specs=[
                pl.BlockSpec((1, cin, h, w), lambda b: (b, 0, 0, 0)),
                pl.BlockSpec((cin, 3, 3), lambda b: (0, 0, 0)),
                pl.BlockSpec((cout, cin, 1), lambda b: (0, 0, 0)),
                pl.BlockSpec((cin, 1, 1), lambda b: (0, 0, 0)),
                pl.BlockSpec((cout, 1, 1), lambda b: (0, 0, 0)),
            ],
            out_specs=pl.BlockSpec((1, cout, ho, wo), lambda b: (b, 0, 0, 0)),
            scratch_shapes=[pltpu.VMEM((cin, hp, wp), jnp.float32)],
        ),
        compiler_params=pltpu.CompilerParams(
            dimension_semantics=("parallel",),
            vmem_limit_bytes=48 * 1024 * 1024),
    )(x_nchw, wdw, wpw, b1, b2)
    return out                                                    # NCHW


def conv_dw_ref(x, w_dw, w_pw, bn1, bn2, *, stride, padding=1, eps=1e-5):
    """Pure-JAX reference mirroring the PyTorch forward (eval-mode BN)."""
    def bn_relu(o, bn):
        g, b, m, v = (a[None, :, None, None] for a in bn)
        return jnp.maximum((o - m) / jnp.sqrt(v + eps) * g + b, 0.0)

    dn = jax.lax.conv_dimension_numbers(x.shape, w_dw.shape,
                                        ('NCHW', 'OIHW', 'NCHW'))
    out = jax.lax.conv_general_dilated(
        x, w_dw, (stride, stride),
        [(padding, padding), (padding, padding)],
        dimension_numbers=dn, feature_group_count=x.shape[1])
    out = bn_relu(out, bn1)
    dn2 = jax.lax.conv_dimension_numbers(out.shape, w_pw.shape,
                                         ('NCHW', 'OIHW', 'NCHW'))
    out = jax.lax.conv_general_dilated(out, w_pw, (1, 1),
                                       [(0, 0), (0, 0)],
                                       dimension_numbers=dn2)
    return bn_relu(out, bn2)


if __name__ == "__main__":
    N, CIN, COUT, H, W = 2, 4, 8, 16, 16
    STRIDE, PADDING = 1, 1

    key = jax.random.PRNGKey(0)
    kx, kdw, kpw, k1, k2, k3, k4, k5, k6, k7, k8 = jax.random.split(key, 11)

    x = jax.random.normal(kx, (N, CIN, H, W), dtype=jnp.float32)
    w_dw = 0.5 * jax.random.normal(kdw, (CIN, 1, 3, 3), dtype=jnp.float32)
    w_pw = 0.5 * jax.random.normal(kpw, (COUT, CIN, 1, 1), dtype=jnp.float32)

    bn1 = (1.0 + 0.1 * jax.random.normal(k1, (CIN,), dtype=jnp.float32),
           0.1 * jax.random.normal(k2, (CIN,), dtype=jnp.float32),
           0.05 * jax.random.normal(k3, (CIN,), dtype=jnp.float32),
           1.0 + 0.1 * jnp.abs(jax.random.normal(k4, (CIN,), dtype=jnp.float32)))
    bn2 = (1.0 + 0.1 * jax.random.normal(k5, (COUT,), dtype=jnp.float32),
           0.1 * jax.random.normal(k6, (COUT,), dtype=jnp.float32),
           0.05 * jax.random.normal(k7, (COUT,), dtype=jnp.float32),
           1.0 + 0.1 * jnp.abs(jax.random.normal(k8, (COUT,), dtype=jnp.float32)))

    out = conv_dw_pallas(x, w_dw, w_pw, bn1, bn2,
                         stride=STRIDE, padding=PADDING)
    out = jax.block_until_ready(out)

    ref = conv_dw_ref(x, w_dw, w_pw, bn1, bn2,
                      stride=STRIDE, padding=PADDING)
    ref = jax.block_until_ready(ref)

    assert out.shape == ref.shape == (N, COUT, H // STRIDE, W // STRIDE)
    np.testing.assert_allclose(np.asarray(out), np.asarray(ref),
                               rtol=1e-4, atol=1e-4)
    print("KERNEL_OK")
</pallas_src>

<mosaic_0001>
module attributes {stable_mosaic.version = 11 : i64} {
  func.func @_convdw_kernel(%arg0: i32, %arg1: memref<1x4x16x16xf32, #tpu.memory_space<vmem>>, %arg2: memref<4x3x3xf32, #tpu.memory_space<vmem>>, %arg3: memref<8x4x1xf32, #tpu.memory_space<vmem>>, %arg4: memref<4x1x1xf32, #tpu.memory_space<vmem>>, %arg5: memref<8x1x1xf32, #tpu.memory_space<vmem>>, %arg6: memref<1x8x16x16xf32, #tpu.memory_space<vmem>>, %arg7: memref<4x18x18xf32, #tpu.memory_space<vmem>>) attributes {dimension_semantics = [#tpu.dimension_semantics<parallel>], iteration_bounds = array<i64: 2>, scalar_prefetch = 0 : i64, scratch_operands = 1 : i64, tpu.core_type = #tpu.core_type<tc>, window_params = [{transform_indices = @transform_0, window_bounds = array<i64: 1, 4, 16, 16>}, {pipeline_mode = #tpu.pipeline_mode<synchronous>, transform_indices = @transform_1, window_bounds = array<i64: 4, 3, 3>}, {pipeline_mode = #tpu.pipeline_mode<synchronous>, transform_indices = @transform_2, window_bounds = array<i64: 8, 4, 1>}, {pipeline_mode = #tpu.pipeline_mode<synchronous>, transform_indices = @transform_3, window_bounds = array<i64: 4, 1, 1>}, {pipeline_mode = #tpu.pipeline_mode<synchronous>, transform_indices = @transform_4, window_bounds = array<i64: 8, 1, 1>}, {transform_indices = @transform_5, window_bounds = array<i64: 1, 8, 16, 16>}]} {
    %cst = arith.constant 0.000000e+00 : f32
    %0 = vector.broadcast %cst : f32 to vector<4x18x18xf32>
    %c0 = arith.constant 0 : index
    %c0_0 = arith.constant 0 : index
    %c0_1 = arith.constant 0 : index
    %1 = vector.load %arg7[%c0, %c0_0, %c0_1] : memref<4x18x18xf32, #tpu.memory_space<vmem>>, vector<4x18x18xf32>
    tpu.vector_store %arg7[%c0, %c0_0, %c0_1], %0 {strides = array<i32>} : memref<4x18x18xf32, #tpu.memory_space<vmem>>, vector<4x18x18xf32>,
    %c0_2 = arith.constant 0 : index
    %c0_3 = arith.constant 0 : index
    %c0_4 = arith.constant 0 : index
    %c0_5 = arith.constant 0 : index
    %2 = vector.load %arg1[%c0_2, %c0_3, %c0_4, %c0_5] : memref<1x4x16x16xf32, #tpu.memory_space<vmem>>, vector<1x4x16x16xf32>
    %3 = vector.shape_cast %2 : vector<1x4x16x16xf32> to vector<4x16x16xf32>
    %c0_6 = arith.constant 0 : index
    %c1 = arith.constant 1 : index
    %c1_7 = arith.constant 1 : index
    %4 = vector.load %arg7[%c0_6, %c1, %c1_7] : memref<4x18x18xf32, #tpu.memory_space<vmem>>, vector<4x16x16xf32>
    tpu.vector_store %arg7[%c0_6, %c1, %c1_7], %3 {strides = array<i32>} : memref<4x18x18xf32, #tpu.memory_space<vmem>>, vector<4x16x16xf32>,
    %c0_8 = arith.constant 0 : index
    %c0_9 = arith.constant 0 : index
    %c0_10 = arith.constant 0 : index
    %5 = vector.load %arg7[%c0_8, %c0_9, %c0_10] : memref<4x18x18xf32, #tpu.memory_space<vmem>>, vector<4x18x18xf32>
    %c0_11 = arith.constant 0 : index
    %c0_12 = arith.constant 0 : index
    %c0_13 = arith.constant 0 : index
    %6 = vector.load %arg2[%c0_11, %c0_12, %c0_13] : memref<4x3x3xf32, #tpu.memory_space<vmem>>, vector<4x3x3xf32>
    %7 = vector.extract_strided_slice %5 {offsets = [0, 0, 0], sizes = [4, 16, 16], strides = [1, 1, 1]} : vector<4x18x18xf32> to vector<4x16x16xf32>
    %8 = vector.extract_strided_slice %6 {offsets = [0, 0, 0], sizes = [4, 1, 1], strides = [1, 1, 1]} : vector<4x3x3xf32> to vector<4x1x1xf32>
    %9 = vector.broadcast %8 : vector<4x1x1xf32> to vector<4x16x16xf32>
    %10 = arith.mulf %7, %9 : vector<4x16x16xf32>
    %11 = vector.extract_strided_slice %5 {offsets = [0, 0, 1], sizes = [4, 16, 16], strides = [1, 1, 1]} : vector<4x18x18xf32> to vector<4x16x16xf32>
    %12 = vector.extract_strided_slice %6 {offsets = [0, 0, 1], sizes = [4, 1, 1], strides = [1, 1, 1]} : vector<4x3x3xf32> to vector<4x1x1xf32>
    %13 = vector.broadcast %12 : vector<4x1x1xf32> to vector<4x16x16xf32>
    %14 = arith.mulf %11, %13 : vector<4x16x16xf32>
    %15 = arith.addf %10, %14 : vector<4x16x16xf32>
    %16 = vector.extract_strided_slice %5 {offsets = [0, 0, 2], sizes = [4, 16, 16], strides = [1, 1, 1]} : vector<4x18x18xf32> to vector<4x16x16xf32>
    %17 = vector.extract_strided_slice %6 {offsets = [0, 0, 2], sizes = [4, 1, 1], strides = [1, 1, 1]} : vector<4x3x3xf32> to vector<4x1x1xf32>
    %18 = vector.broadcast %17 : vector<4x1x1xf32> to vector<4x16x16xf32>
    %19 = arith.mulf %16, %18 : vector<4x16x16xf32>
    %20 = arith.addf %15, %19 : vector<4x16x16xf32>
    %21 = vector.extract_strided_slice %5 {offsets = [0, 1, 0], sizes = [4, 16, 16], strides = [1, 1, 1]} : vector<4x18x18xf32> to vector<4x16x16xf32>
    %22 = vector.extract_strided_slice %6 {offsets = [0, 1, 0], sizes = [4, 1, 1], strides = [1, 1, 1]} : vector<4x3x3xf32> to vector<4x1x1xf32>
    %23 = vector.broadcast %22 : vector<4x1x1xf32> to vector<4x16x16xf32>
    %24 = arith.mulf %21, %23 : vector<4x16x16xf32>
    %25 = arith.addf %20, %24 : vector<4x16x16xf32>
    %26 = vector.extract_strided_slice %5 {offsets = [0, 1, 1], sizes = [4, 16, 16], strides = [1, 1, 1]} : vector<4x18x18xf32> to vector<4x16x16xf32>
    %27 = vector.extract_strided_slice %6 {offsets = [0, 1, 1], sizes = [4, 1, 1], strides = [1, 1, 1]} : vector<4x3x3xf32> to vector<4x1x1xf32>
    %28 = vector.broadcast %27 : vector<4x1x1xf32> to vector<4x16x16xf32>
    %29 = arith.mulf %26, %28 : vector<4x16x16xf32>
    %30 = arith.addf %25, %29 : vector<4x16x16xf32>
    %31 = vector.extract_strided_slice %5 {offsets = [0, 1, 2], sizes = [4, 16, 16], strides = [1, 1, 1]} : vector<4x18x18xf32> to vector<4x16x16xf32>
    %32 = vector.extract_strided_slice %6 {offsets = [0, 1, 2], sizes = [4, 1, 1], strides = [1, 1, 1]} : vector<4x3x3xf32> to vector<4x1x1xf32>
    %33 = vector.broadcast %32 : vector<4x1x1xf32> to vector<4x16x16xf32>
    %34 = arith.mulf %31, %33 : vector<4x16x16xf32>
    %35 = arith.addf %30, %34 : vector<4x16x16xf32>
    %36 = vector.extract_strided_slice %5 {offsets = [0, 2, 0], sizes = [4, 16, 16], strides = [1, 1, 1]} : vector<4x18x18xf32> to vector<4x16x16xf32>
    %37 = vector.extract_strided_slice %6 {offsets = [0, 2, 0], sizes = [4, 1, 1], strides = [1, 1, 1]} : vector<4x3x3xf32> to vector<4x1x1xf32>
    %38 = vector.broadcast %37 : vector<4x1x1xf32> to vector<4x16x16xf32>
    %39 = arith.mulf %36, %38 : vector<4x16x16xf32>
    %40 = arith.addf %35, %39 : vector<4x16x16xf32>
    %41 = vector.extract_strided_slice %5 {offsets = [0, 2, 1], sizes = [4, 16, 16], strides = [1, 1, 1]} : vector<4x18x18xf32> to vector<4x16x16xf32>
    %42 = vector.extract_strided_slice %6 {offsets = [0, 2, 1], sizes = [4, 1, 1], strides = [1, 1, 1]} : vector<4x3x3xf32> to vector<4x1x1xf32>
    %43 = vector.broadcast %42 : vector<4x1x1xf32> to vector<4x16x16xf32>
    %44 = arith.mulf %41, %43 : vector<4x16x16xf32>
    %45 = arith.addf %40, %44 : vector<4x16x16xf32>
    %46 = vector.extract_strided_slice %5 {offsets = [0, 2, 2], sizes = [4, 16, 16], strides = [1, 1, 1]} : vector<4x18x18xf32> to vector<4x16x16xf32>
    %47 = vector.extract_strided_slice %6 {offsets = [0, 2, 2], sizes = [4, 1, 1], strides = [1, 1, 1]} : vector<4x3x3xf32> to vector<4x1x1xf32>
    %48 = vector.broadcast %47 : vector<4x1x1xf32> to vector<4x16x16xf32>
    %49 = arith.mulf %46, %48 : vector<4x16x16xf32>
    %50 = arith.addf %45, %49 : vector<4x16x16xf32>
    %c0_14 = arith.constant 0 : index
    %c0_15 = arith.constant 0 : index
    %c0_16 = arith.constant 0 : index
    %51 = vector.load %arg4[%c0_14, %c0_15, %c0_16] : memref<4x1x1xf32, #tpu.memory_space<vmem>>, vector<4x1x1xf32>
    %52 = vector.broadcast %51 : vector<4x1x1xf32> to vector<4x16x16xf32>
    %53 = arith.addf %50, %52 : vector<4x16x16xf32>
    %cst_17 = arith.constant 0.000000e+00 : f32
    %54 = vector.broadcast %cst_17 : f32 to vector<4x16x16xf32>
    %55 = arith.maximumf %53, %54 : vector<4x16x16xf32>
    %c0_18 = arith.constant 0 : index
    %c0_19 = arith.constant 0 : index
    %c0_20 = arith.constant 0 : index
    %56 = vector.load %arg3[%c0_18, %c0_19, %c0_20] : memref<8x4x1xf32, #tpu.memory_space<vmem>>, vector<8x4x1xf32>
    %57 = vector.extract_strided_slice %56 {offsets = [0, 0, 0], sizes = [8, 1, 1], strides = [1, 1, 1]} : vector<8x4x1xf32> to vector<8x1x1xf32>
    %58 = vector.extract_strided_slice %55 {offsets = [0, 0, 0], sizes = [1, 16, 16], strides = [1, 1, 1]} : vector<4x16x16xf32> to vector<1x16x16xf32>
    %59 = vector.broadcast %57 : vector<8x1x1xf32> to vector<8x16x16xf32>
    %60 = vector.broadcast %58 : vector<1x16x16xf32> to vector<8x16x16xf32>
    %61 = arith.mulf %59, %60 : vector<8x16x16xf32>
    %62 = vector.extract_strided_slice %56 {offsets = [0, 1, 0], sizes = [8, 1, 1], strides = [1, 1, 1]} : vector<8x4x1xf32> to vector<8x1x1xf32>
    %63 = vector.extract_strided_slice %55 {offsets = [1, 0, 0], sizes = [1, 16, 16], strides = [1, 1, 1]} : vector<4x16x16xf32> to vector<1x16x16xf32>
    %64 = vector.broadcast %62 : vector<8x1x1xf32> to vector<8x16x16xf32>
    %65 = vector.broadcast %63 : vector<1x16x16xf32> to vector<8x16x16xf32>
    %66 = arith.mulf %64, %65 : vector<8x16x16xf32>
    %67 = arith.addf %61, %66 : vector<8x16x16xf32>
    %68 = vector.extract_strided_slice %56 {offsets = [0, 2, 0], sizes = [8, 1, 1], strides = [1, 1, 1]} : vector<8x4x1xf32> to vector<8x1x1xf32>
    %69 = vector.extract_strided_slice %55 {offsets = [2, 0, 0], sizes = [1, 16, 16], strides = [1, 1, 1]} : vector<4x16x16xf32> to vector<1x16x16xf32>
    %70 = vector.broadcast %68 : vector<8x1x1xf32> to vector<8x16x16xf32>
    %71 = vector.broadcast %69 : vector<1x16x16xf32> to vector<8x16x16xf32>
    %72 = arith.mulf %70, %71 : vector<8x16x16xf32>
    %73 = arith.addf %67, %72 : vector<8x16x16xf32>
    %74 = vector.extract_strided_slice %56 {offsets = [0, 3, 0], sizes = [8, 1, 1], strides = [1, 1, 1]} : vector<8x4x1xf32> to vector<8x1x1xf32>
    %75 = vector.extract_strided_slice %55 {offsets = [3, 0, 0], sizes = [1, 16, 16], strides = [1, 1, 1]} : vector<4x16x16xf32> to vector<1x16x16xf32>
    %76 = vector.broadcast %74 : vector<8x1x1xf32> to vector<8x16x16xf32>
    %77 = vector.broadcast %75 : vector<1x16x16xf32> to vector<8x16x16xf32>
    %78 = arith.mulf %76, %77 : vector<8x16x16xf32>
    %79 = arith.addf %73, %78 : vector<8x16x16xf32>
    %c0_21 = arith.constant 0 : index
    %c0_22 = arith.constant 0 : index
    %c0_23 = arith.constant 0 : index
    %80 = vector.load %arg5[%c0_21, %c0_22, %c0_23] : memref<8x1x1xf32, #tpu.memory_space<vmem>>, vector<8x1x1xf32>
    %81 = vector.broadcast %80 : vector<8x1x1xf32> to vector<8x16x16xf32>
    %82 = arith.addf %79, %81 : vector<8x16x16xf32>
    %cst_24 = arith.constant 0.000000e+00 : f32
    %83 = vector.broadcast %cst_24 : f32 to vector<8x16x16xf32>
    %84 = arith.maximumf %82, %83 : vector<8x16x16xf32>
    %c0_25 = arith.constant 0 : index
    %c0_26 = arith.constant 0 : index
    %c0_27 = arith.constant 0 : index
    %c0_28 = arith.constant 0 : index
    %85 = vector.load %arg6[%c0_25, %c0_26, %c0_27, %c0_28] : memref<1x8x16x16xf32, #tpu.memory_space<vmem>>, vector<1x8x16x16xf32>
    %86 = vector.shape_cast %85 : vector<1x8x16x16xf32> to vector<8x16x16xf32>
    %87 = vector.shape_cast %84 : vector<8x16x16xf32> to vector<1x8x16x16xf32>
    tpu.vector_store %arg6[%c0_25, %c0_26, %c0_27, %c0_28], %87 {strides = array<i32>} : memref<1x8x16x16xf32, #tpu.memory_space<vmem>>, vector<1x8x16x16xf32>,
    return
  }
  func.func @transform_0(%arg0: i32) -> (i32, i32, i32, i32) {
    %c0_i32 = arith.constant 0 : i32
    %c0_i32_0 = arith.constant 0 : i32
    %c0_i32_1 = arith.constant 0 : i32
    %c0_i32_2 = arith.constant 0 : i32
    return %arg0, %c0_i32, %c0_i32_0, %c0_i32_1 : i32, i32, i32, i32
  }
  func.func @transform_1(%arg0: i32) -> (i32, i32, i32) {
    %c0_i32 = arith.constant 0 : i32
    %c0_i32_0 = arith.constant 0 : i32
    %c0_i32_1 = arith.constant 0 : i32
    %c0_i32_2 = arith.constant 0 : i32
    return %c0_i32, %c0_i32_0, %c0_i32_1 : i32, i32, i32
  }
  func.func @transform_2(%arg0: i32) -> (i32, i32, i32) {
    %c0_i32 = arith.constant 0 : i32
    %c0_i32_0 = arith.constant 0 : i32
    %c0_i32_1 = arith.constant 0 : i32
    %c0_i32_2 = arith.constant 0 : i32
    return %c0_i32, %c0_i32_0, %c0_i32_1 : i32, i32, i32
  }
  func.func @transform_3(%arg0: i32) -> (i32, i32, i32) {
    %c0_i32 = arith.constant 0 : i32
    %c0_i32_0 = arith.constant 0 : i32
    %c0_i32_1 = arith.constant 0 : i32
    %c0_i32_2 = arith.constant 0 : i32
    return %c0_i32, %c0_i32_0, %c0_i32_1 : i32, i32, i32
  }
  func.func @transform_4(%arg0: i32) -> (i32, i32, i32) {
    %c0_i32 = arith.constant 0 : i32
    %c0_i32_0 = arith.constant 0 : i32
    %c0_i32_1 = arith.constant 0 : i32
    %c0_i32_2 = arith.constant 0 : i32
    return %c0_i32, %c0_i32_0, %c0_i32_1 : i32, i32, i32
  }
  func.func @transform_5(%arg0: i32) -> (i32, i32, i32, i32) {
    %c0_i32 = arith.constant 0 : i32
    %c0_i32_0 = arith.constant 0 : i32
    %c0_i32_1 = arith.constant 0 : i32
    %c0_i32_2 = arith.constant 0 : i32
    return %arg0, %c0_i32, %c0_i32_0, %c0_i32_1 : i32, i32, i32, i32
  }
}

</mosaic_0001>

<llo_original>
// kernel: tpu_custom_call.1
$region0: #{tpu_custom_call.1}
  #allocation0 [shape = 'u32[]', space=smem, size = 0x4, offset = 0x4, fixed_abs, tag = 'smem constant byte address 0x4 - core index']
  #allocation1 [shape = 'u32[144,128]{1,0:T(1,128)}', space=vmem, size = 0x12000, scoped, tag = 'internal scratch']
  #allocation2 [shape = 'f32[4,18,18]{2,1,0:T(8,128)}', space=vmem, size = 0xc000, scoped, tag = 'scratch operand']
  %s0 = inlined_call_operand.hbm [shape: f32[2,4,16,16], index: 0, kind: input, shape index: {}]
  %s1 = inlined_call_operand.vmem [shape: f32[4,3,3], index: 1, kind: input, shape index: {}]
  %s2 = inlined_call_operand.vmem [shape: f32[8,4,1], index: 2, kind: input, shape index: {}]
  %s3 = inlined_call_operand.vmem [shape: f32[4,1,1], index: 3, kind: input, shape index: {}]
  %s4 = inlined_call_operand.vmem [shape: f32[8,1,1], index: 4, kind: input, shape index: {}]
  %s5 = inlined_call_operand.hbm [shape: f32[2,8,16,16], index: 5, kind: output, shape index: {}]
  %s6 = sld [smem:[#allocation0]]
  $region57: #{tpu_custom_call.1} parent=0
    _
  %s8 = ssub.s32 1, %s6
  %s9 = scalar_select 0, %s8, %s6
  $region1: #{tpu_custom_call.1} parent=0
    #allocation3 [shape = 'u8[65536]{0}', space=vmem, size = 0x10000, scoped, tag = 'input window, operand 0']
    #allocation4 [shape = 's32[2]{0}', space=sflag, size = 0x8, scoped, tag = 'scoped memory for tpu_custom_call.1']
    #allocation5 [shape = 's32[2]{0}', space=sflag, size = 0x8, scoped, tag = 'scoped memory for tpu_custom_call.1']
    #allocation6 [shape = 'u8[131072]{0}', space=vmem, size = 0x20000, scoped, tag = 'output window, operand 0']
    %10 = vsyncpa [#allocation4], 0
    %s11 = scalar_lea.sflag [#allocation4], 1
    %12 = vsyncpa %s11, 0
    %13 = vsyncpa [#allocation5], 0
    %s14 = scalar_lea.sflag [#allocation5], 1
    %15 = vsyncpa %s14, 0
    loop: start=0, step=1, limit=4
    $region2: #{tpu_custom_call.1} parent=1 // loop_pre_header
      _
    $region3: #{tpu_custom_call.1} parent=1 // loop_header
      %s17 = sphi 0, %s21
      %p18 = scmp.ge.s32.totalorder %s17, 4
      %s27 = sphi 0, %s29
      %s30 = sphi 0, %s27
      %s31 = sphi 0, %s30
      %s47 = sphi 0, %s31
      %s51 = sphi 0, %s51
      %s53 = sphi 0, %s51
      %s54 = sphi 0, %s53
      %s68 = sphi 0, %s54
      %s72 = sphi 0, %s72
      %s74 = sphi 0, %s72
      %s75 = sphi 0, %s74
      %s89 = sphi 0, %s75
      %s93 = sphi 0, %s93
      %s95 = sphi 0, %s93
      %s96 = sphi 0, %s95
      %s110 = sphi 0, %s96
      %s114 = sphi 0, %s114
      %s116 = sphi 0, %s114
      %s117 = sphi 0, %s116
      %s131 = sphi 0, %s117
      %s137 = sphi 0, %s139
      %s140 = sphi 0, %s137
      %s141 = sphi 0, %s140
      %s157 = sphi 0, %s141
    $region4: #{tpu_custom_call.1} parent=1 // loop_header_branch
      %20 = sbr.rel (%p18) target = $region8
    $region5: #{tpu_custom_call.1} parent=1 // loop_body
      %s22 = ssub.s32 %s17, 1
      %s23 = ssub.s32 %s17, 2
      %s24 = sadd.s32 %s17, 1
      %s25 = ssub.s32 %s17, %s24
      %p26 = scmp.eq.s32.totalorder %s25, 0
      %s28 = sadd.s32 %s27, 1
      %s29 = scalar_select %p26, %s27, %s28
      %p32 = pneg %p26
      %p33 = scmp.eq.s32.totalorder %s17, 1
      %p34 = por %p32, %p33
      %p35 = scmp.ne.s32.totalorder %s27, %s30
      %p36 = scmp.eq.s32.totalorder %s17, 0
      %p37 = por %p35, %p36
      %p38 = scmp.ne.s32.totalorder %s27, %s30
      %p39 = scmp.eq.s32.totalorder %s22, 1
      %p40 = por %p38, %p39
      %p41 = scmp.ne.s32.totalorder %s30, %s31
      %p42 = scmp.eq.s32.totalorder %s22, 0
      %p43 = por %p41, %p42
      %p44 = scmp.ne.s32.totalorder %s30, %s31
      %p45 = scmp.eq.s32.totalorder %s23, 1
      %p46 = por %p44, %p45
      %p48 = scmp.ne.s32.totalorder %s31, %s47
      %p49 = scmp.eq.s32.totalorder %s23, 0
      %p50 = por %p48, %p49
      %s52 = sadd.s32 %s51, 1
      %p55 = scmp.eq.s32.totalorder %s17, 1
      %p56 = scmp.ne.s32.totalorder %s51, %s53
      %p57 = scmp.eq.s32.totalorder %s17, 0
      %p58 = por %p56, %p57
      %p59 = scmp.ne.s32.totalorder %s51, %s53
      %p60 = scmp.eq.s32.totalorder %s22, 1
      %p61 = por %p59, %p60
      %p62 = scmp.ne.s32.totalorder %s53, %s54
      %p63 = scmp.eq.s32.totalorder %s22, 0
      %p64 = por %p62, %p63
      %p65 = scmp.ne.s32.totalorder %s53, %s54
      %p66 = scmp.eq.s32.totalorder %s23, 1
      %p67 = por %p65, %p66
      %p69 = scmp.ne.s32.totalorder %s54, %s68
      %p70 = scmp.eq.s32.totalorder %s23, 0
      %p71 = por %p69, %p70
      %s73 = sadd.s32 %s72, 1
      %p76 = scmp.eq.s32.totalorder %s17, 1
      %p77 = scmp.ne.s32.totalorder %s72, %s74
      %p78 = scmp.eq.s32.totalorder %s17, 0
      %p79 = por %p77, %p78
      %p80 = scmp.ne.s32.totalorder %s72, %s74
      %p81 = scmp.eq.s32.totalorder %s22, 1
      %p82 = por %p80, %p81
      %p83 = scmp.ne.s32.totalorder %s74, %s75
      %p84 = scmp.eq.s32.totalorder %s22, 0
      %p85 = por %p83, %p84
      %p86 = scmp.ne.s32.totalorder %s74, %s75
      %p87 = scmp.eq.s32.totalorder %s23, 1
      %p88 = por %p86, %p87
      %p90 = scmp.ne.s32.totalorder %s75, %s89
      %p91 = scmp.eq.s32.totalorder %s23, 0
      %p92 = por %p90, %p91
      %s94 = sadd.s32 %s93, 1
      %p97 = scmp.eq.s32.totalorder %s17, 1
      %p98 = scmp.ne.s32.totalorder %s93, %s95
      %p99 = scmp.eq.s32.totalorder %s17, 0
      %p100 = por %p98, %p99
      %p101 = scmp.ne.s32.totalorder %s93, %s95
      %p102 = scmp.eq.s32.totalorder %s22, 1
      %p103 = por %p101, %p102
      %p104 = scmp.ne.s32.totalorder %s95, %s96
      %p105 = scmp.eq.s32.totalorder %s22, 0
      %p106 = por %p104, %p105
      %p107 = scmp.ne.s32.totalorder %s95, %s96
      %p108 = scmp.eq.s32.totalorder %s23, 1
      %p109 = por %p107, %p108
      %p111 = scmp.ne.s32.totalorder %s96, %s110
      %p112 = scmp.eq.s32.totalorder %s23, 0
      %p113 = por %p111, %p112
      %s115 = sadd.s32 %s114, 1
      %p118 = scmp.eq.s32.totalorder %s17, 1
      %p119 = scmp.ne.s32.totalorder %s114, %s116
      %p120 = scmp.eq.s32.totalorder %s17, 0
      %p121 = por %p119, %p120
      %p122 = scmp.ne.s32.totalorder %s114, %s116
      %p123 = scmp.eq.s32.totalorder %s22, 1
      %p124 = por %p122, %p123
      %p125 = scmp.ne.s32.totalorder %s116, %s117
      %p126 = scmp.eq.s32.totalorder %s22, 0
      %p127 = por %p125, %p126
      %p128 = scmp.ne.s32.totalorder %s116, %s117
      %p129 = scmp.eq.s32.totalorder %s23, 1
      %p130 = por %p128, %p129
      %p132 = scmp.ne.s32.totalorder %s117, %s131
      %p133 = scmp.eq.s32.totalorder %s23, 0
      %p134 = por %p132, %p133
      %s135 = ssub.s32 %s17, %s24
      %p136 = scmp.eq.s32.totalorder %s135, 0
      %s138 = sadd.s32 %s137, 1
      %s139 = scalar_select %p136, %s137, %s138
      %p142 = pneg %p136
      %p143 = scmp.eq.s32.totalorder %s17, 1
      %p144 = por %p142, %p143
      %p145 = scmp.ne.s32.totalorder %s137, %s140
      %p146 = scmp.eq.s32.totalorder %s17, 0
      %p147 = por %p145, %p146
      %p148 = scmp.ne.s32.totalorder %s137, %s140
      %p149 = scmp.eq.s32.totalorder %s22, 1
      %p150 = por %p148, %p149
      %p151 = scmp.ne.s32.totalorder %s140, %s141
      %p152 = scmp.eq.s32.totalorder %s22, 0
      %p153 = por %p151, %p152
      %p154 = scmp.ne.s32.totalorder %s140, %s141
      %p155 = scmp.eq.s32.totalorder %s23, 1
      %p156 = por %p154, %p155
      %p158 = scmp.ne.s32.totalorder %s141, %s157
      %p159 = scmp.eq.s32.totalorder %s23, 0
      %p160 = por %p158, %p159
      %p161 = scmp.le.s32.totalorder 1, %s17
      %p162 = scmp.lt.s32.totalorder %s17, 3
      %p163 = pnand %p161, %p162
      %p164 = pneg %p163
      // Predicated region
      $region9: #{tpu_custom_call.1} parent=5 // pred_check
        _
      $region10: #{tpu_custom_call.1} parent=5 // pred_check_branch
        %166 = sbr.rel (%p163) target = $region12
      $region11: #{tpu_custom_call.1} parent=5 // pred_region
        %s167 = ssub.s32 %s17, 1
        // Predicated region
        $region13: #{tpu_custom_call.1} parent=11 // pred_check
          %p168 = pneg %p64
        $region14: #{tpu_custom_call.1} parent=11 // pred_check_branch
          %170 = sbr.rel (%p168) target = $region16
        $region15: #{tpu_custom_call.1} parent=11 // pred_region
          _
        $region16: #{tpu_custom_call.1} parent=11 // pred_fallthru
          _
        // Predicated region
        $region17: #{tpu_custom_call.1} parent=11 // pred_check
          %p171 = pneg %p85
        $region18: #{tpu_custom_call.1} parent=11 // pred_check_branch
          %173 = sbr.rel (%p171) target = $region20
        $region19: #{tpu_custom_call.1} parent=11 // pred_region
          _
        $region20: #{tpu_custom_call.1} parent=11 // pred_fallthru
          _
        // Predicated region
        $region21: #{tpu_custom_call.1} parent=11 // pred_check
          %p174 = pneg %p106
        $region22: #{tpu_custom_call.1} parent=11 // pred_check_branch
          %176 = sbr.rel (%p174) target = $region24
        $region23: #{tpu_custom_call.1} parent=11 // pred_region
          _
        $region24: #{tpu_custom_call.1} parent=11 // pred_fallthru
          _
        // Predicated region
        $region25: #{tpu_custom_call.1} parent=11 // pred_check
          %p177 = pneg %p127
        $region26: #{tpu_custom_call.1} parent=11 // pred_check_branch
          %179 = sbr.rel (%p177) target = $region28
        $region27: #{tpu_custom_call.1} parent=11 // pred_region
          _
        $region28: #{tpu_custom_call.1} parent=11 // pred_fallthru
          _
      $region12: #{tpu_custom_call.1} parent=5 // pred_fallthru
        _
      %p180 = scmp.lt.s32.totalorder %s17, 2
      // Predicated region
      $region29: #{tpu_custom_call.1} parent=5 // pred_check
        %p181 = pneg %p180
      $region30: #{tpu_custom_call.1} parent=5 // pred_check_branch
        %183 = sbr.rel (%p181) target = $region32
      $region31: #{tpu_custom_call.1} parent=5 // pred_region
        // Predicated region
        $region33: #{tpu_custom_call.1} parent=31 // pred_check
          %p184 = pneg %p37
        $region34: #{tpu_custom_call.1} parent=31 // pred_check_branch
          %186 = sbr.rel (%p184) target = $region36
        $region35: #{tpu_custom_call.1} parent=31 // pred_region
          %s187 = sand.u32 %s27, 1
          %s188 = scalar_lea.sflag [#allocation4], %s187
          %s189 = sand.u32 %s27, 1
          %s190 = smul.addr %s189, 64
          %s191 = scalar_lea.vmem [#allocation3], %s190
          %s193 = ssub.s32 1024, 1024
          %194 = vsyncadd %s188, %s193
          %s195 = smul.addr %s17, 8
          %s196 = smul.addr %s195, 128
          %s197 = scalar_lea.hbm %s0, %s196
          %s198 = sshll.u32 %s191, 4
          %s199 = int_to_ptr.vmem [resolvable:$true] %s198
          %204 = dma.hbm_to_vmem [thread:$0]  %s197, 1024, %s199, %s188, 128, 128, 8
        $region36: #{tpu_custom_call.1} parent=31 // pred_fallthru
          _
      $region32: #{tpu_custom_call.1} parent=5 // pred_fallthru
        _
      %p205 = scmp.le.s32.totalorder 1, %s17
      %p206 = scmp.lt.s32.totalorder %s17, 3
      %p207 = pnand %p205, %p206
      %p208 = pneg %p207
      // Predicated region
      $region37: #{tpu_custom_call.1} parent=5 // pred_check
        _
      $region38: #{tpu_custom_call.1} parent=5 // pred_check_branch
        %210 = sbr.rel (%p207) target = $region40
      $region39: #{tpu_custom_call.1} parent=5 // pred_region
        %s211 = ssub.s32 %s17, 1
        %s212 = sand.u32 %s30, 1
        %s213 = scalar_lea.sflag [#allocation4], %s212
        %s214 = sand.u32 %s30, 1
        %s215 = smul.addr %s214, 64
        %s216 = scalar_lea.vmem [#allocation3], %s215
        // Predicated region
        $region41: #{tpu_custom_call.1} parent=39 // pred_check
          %p217 = pneg %p43
        $region42: #{tpu_custom_call.1} parent=39 // pred_check_branch
          %219 = sbr.rel (%p217) target = $region44
        $region43: #{tpu_custom_call.1} parent=39 // pred_region
          %220 = dma.done %s213, 1024
        $region44: #{tpu_custom_call.1} parent=39 // pred_fallthru
          _
        %s221 = sand.u32 %s30, 1
        %s222 = scalar_lea.sflag [#allocation4], %s221
        %s223 = sand.u32 %s30, 1
        %s224 = smul.addr %s223, 64
        %s225 = scalar_lea.vmem [#allocation3], %s224
        %p226 = pneg %p43
        %p227 = pneg %p40
        %p228 = pneg %p64
        %p229 = pneg %p61
        %p230 = pneg %p85
        %p231 = pneg %p82
        %p232 = pneg %p106
        %p233 = pneg %p103
        %p234 = pneg %p127
        %p235 = pneg %p124
        %p236 = pneg %p153
        %p237 = pneg %p150
        %s238 = sand.u32 %s140, 1
        %s239 = scalar_lea.sflag [#allocation5], %s238
        %s240 = sand.u32 %s140, 1
        %s241 = smul.addr %s240, 128
        %s242 = scalar_lea.vmem [#allocation6], %s241
        %vm243 = vcmask 146432
        %244 = vst.msk [vmem:[#allocation2] sm:$0xff] %vm243, 0.0
        %245 = vst.msk [vmem:[#allocation2 + $0x8] sm:$0xff] %vm243, 0.0
        %vm246 = vcmask 140288
        %247 = vst.msk [vmem:[#allocation2 + $0x10] sm:$0x3] %vm246, 0.0
        %248 = vst.msk [vmem:[#allocation2 + $0x18] sm:$0xff] %vm243, 0.0
        %249 = vst.msk [vmem:[#allocation2 + $0x20] sm:$0xff] %vm243, 0.0
        %250 = vst.msk [vmem:[#allocation2 + $0x28] sm:$0x3] %vm246, 0.0
        %251 = vst.msk [vmem:[#allocation2 + $0x30] sm:$0xff] %vm243, 0.0
        %252 = vst.msk [vmem:[#allocation2 + $0x38] sm:$0xff] %vm243, 0.0
        %253 = vst.msk [vmem:[#allocation2 + $0x40] sm:$0x3] %vm246, 0.0
        %254 = vst.msk [vmem:[#allocation2 + $0x48] sm:$0xff] %vm243, 0.0
        %255 = vst.msk [vmem:[#allocation2 + $0x50] sm:$0xff] %vm243, 0.0
        %256 = vst.msk [vmem:[#allocation2 + $0x58] sm:$0x3] %vm246, 0.0
        %v257 = vld [vmem:[%s216] sm:$0xff]
        %v258 = vld [vmem:[%s216 + $0x8] sm:$0xff]
        %v259 = vld [vmem:[%s216 + $0x10] sm:$0xff]
        %v260 = vld [vmem:[%s216 + $0x18] sm:$0xff]
        %v261 = vld [vmem:[%s216 + $0x20] sm:$0xff]
        %v262 = vld [vmem:[%s216 + $0x28] sm:$0xff]
        %v263 = vld [vmem:[%s216 + $0x30] sm:$0xff]
        %v264 = vld [vmem:[%s216 + $0x38] sm:$0xff]
        %273 = vrot.lane.b32.xlu0 %v257, 1
        %v274 = vpop.permute.xlu0 %273
        %275 = vrot.lane.b32.xlu0 %v258, 1
        %v276 = vpop.permute.xlu0 %275
        %277 = vrot.lane.b32.xlu0 %v259, 1
        %v278 = vpop.permute.xlu0 %277
        %279 = vrot.lane.b32.xlu0 %v260, 1
        %v280 = vpop.permute.xlu0 %279
        %281 = vrot.lane.b32.xlu0 %v261, 1
        %v282 = vpop.permute.xlu0 %281
        %283 = vrot.lane.b32.xlu0 %v262, 1
        %v284 = vpop.permute.xlu0 %283
        %285 = vrot.lane.b32.xlu0 %v263, 1
        %v286 = vpop.permute.xlu0 %285
        %287 = vrot.lane.b32.xlu0 %v264, 1
        %v288 = vpop.permute.xlu0 %287
        %vm297 = vcmask 138248
        %298 = vst.msk [vmem:[#allocation2 + $0x1] sm:$0xff] %vm297, %v274
        %299 = vst.msk [vmem:[#allocation2 + $0x9] sm:$0xff] %vm297, %v276
        %300 = vst.msk [vmem:[#allocation2 + $0x19] sm:$0xff] %vm297, %v278
        %301 = vst.msk [vmem:[#allocation2 + $0x21] sm:$0xff] %vm297, %v280
        %302 = vst.msk [vmem:[#allocation2 + $0x31] sm:$0xff] %vm297, %v282
        %303 = vst.msk [vmem:[#allocation2 + $0x39] sm:$0xff] %vm297, %v284
        %304 = vst.msk [vmem:[#allocation2 + $0x49] sm:$0xff] %vm297, %v286
        %305 = vst.msk [vmem:[#allocation2 + $0x51] sm:$0xff] %vm297, %v288
        %v306 = vld [vmem:[#allocation2] sm:$0xff]
        %v307 = vld [vmem:[#allocation2 + $0x8] sm:$0xff]
        %v308 = vld [vmem:[#allocation2 + $0x10] sm:$0x3]
        %v309 = vld [vmem:[#allocation2 + $0x18] sm:$0xff]
        %v310 = vld [vmem:[#allocation2 + $0x20] sm:$0xff]
        %v311 = vld [vmem:[#allocation2 + $0x28] sm:$0x3]
        %v312 = vld [vmem:[#allocation2 + $0x30] sm:$0xff]
        %v313 = vld [vmem:[#allocation2 + $0x38] sm:$0xff]
        %v314 = vld [vmem:[#allocation2 + $0x40] sm:$0x3]
        %v315 = vld [vmem:[#allocation2 + $0x48] sm:$0xff]
        %v316 = vld [vmem:[#allocation2 + $0x50] sm:$0xff]
        %v317 = vld [vmem:[#allocation2 + $0x58] sm:$0x3]
        %v318 = vld [vmem:[%s1] sm:$0x7]
        %v319 = vld [vmem:[%s1 + $0x4] sm:$0x7]
        %v320 = vld [vmem:[%s1 + $0x8] sm:$0x7]
        %v321 = vld [vmem:[%s1 + $0xc] sm:$0x7]
        %s323 = vtos %v318
        %v324 = vstv %s323
        %s327 = vtos %v319
        %v328 = vstv %s327
        %s331 = vtos %v320
        %v332 = vstv %s331
        %s335 = vtos %v321
        %v336 = vstv %s335
        %v338 = vmul.f32 %v306, %v324
        %v339 = vmul.f32 %v307, %v324
        %v340 = vmul.f32 %v309, %v328
        %v341 = vmul.f32 %v310, %v328
        %v342 = vmul.f32 %v312, %v332
        %v343 = vmul.f32 %v313, %v332
        %v344 = vmul.f32 %v315, %v336
        %v345 = vmul.f32 %v316, %v336
        %346 = vrot.lane.b32.xlu0 %v318, 127
        %v347 = vpop.permute.xlu0 %346
        %348 = vrot.lane.b32.xlu0 %v319, 127
        %v349 = vpop.permute.xlu0 %348
        %350 = vrot.lane.b32.xlu0 %v320, 127
        %v351 = vpop.permute.xlu0 %350
        %352 = vrot.lane.b32.xlu0 %v321, 127
        %v353 = vpop.permute.xlu0 %352
        %s354 = vtos %v347
        %v355 = vstv %s354
        %s357 = vtos %v349
        %v358 = vstv %s357
        %s360 = vtos %v351
        %v361 = vstv %s360
        %s363 = vtos %v353
        %v364 = vstv %s363
        %v366 = vmul.f32 %v306, %v355
        %v367 = vmul.f32 %v307, %v355
        %v368 = vmul.f32 %v309, %v358
        %v369 = vmul.f32 %v310, %v358
        %v370 = vmul.f32 %v312, %v361
        %v371 = vmul.f32 %v313, %v361
        %v372 = vmul.f32 %v315, %v364
        %v373 = vmul.f32 %v316, %v364
        %382 = vrot.lane.b32.xlu0 %v366, 127
        %v383 = vpop.permute.xlu0 %382
        %384 = vrot.lane.b32.xlu0 %v367, 127
        %v385 = vpop.permute.xlu0 %384
        %386 = vrot.lane.b32.xlu0 %v368, 127
        %v387 = vpop.permute.xlu0 %386
        %388 = vrot.lane.b32.xlu0 %v369, 127
        %v389 = vpop.permute.xlu0 %388
        %390 = vrot.lane.b32.xlu0 %v370, 127
        %v391 = vpop.permute.xlu0 %390
        %392 = vrot.lane.b32.xlu0 %v371, 127
        %v393 = vpop.permute.xlu0 %392
        %394 = vrot.lane.b32.xlu0 %v372, 127
        %v395 = vpop.permute.xlu0 %394
        %396 = vrot.lane.b32.xlu0 %v373, 127
        %v397 = vpop.permute.xlu0 %396
        %v406 = vadd.f32 %v338, %v383
        %v407 = vadd.f32 %v339, %v385
        %v408 = vadd.f32 %v340, %v387
        %v409 = vadd.f32 %v341, %v389
        %v410 = vadd.f32 %v342, %v391
        %v411 = vadd.f32 %v343, %v393
        %v412 = vadd.f32 %v344, %v395
        %v413 = vadd.f32 %v345, %v397
        %414 = vrot.lane.b32.xlu0 %v318, 126
        %v415 = vpop.permute.xlu0 %414
        %416 = vrot.lane.b32.xlu0 %v319, 126
        %v417 = vpop.permute.xlu0 %416
        %418 = vrot.lane.b32.xlu0 %v320, 126
        %v419 = vpop.permute.xlu0 %418
        %420 = vrot.lane.b32.xlu0 %v321, 126
        %v421 = vpop.permute.xlu0 %420
        %s422 = vtos %v415
        %v423 = vstv %s422
        %s425 = vtos %v417
        %v426 = vstv %s425
        %s428 = vtos %v419
        %v429 = vstv %s428
        %s431 = vtos %v421
        %v432 = vstv %s431
        %v434 = vmul.f32 %v306, %v423
        %v435 = vmul.f32 %v307, %v423
        %v436 = vmul.f32 %v309, %v426
        %v437 = vmul.f32 %v310, %v426
        %v438 = vmul.f32 %v312, %v429
        %v439 = vmul.f32 %v313, %v429
        %v440 = vmul.f32 %v315, %v432
        %v441 = vmul.f32 %v316, %v432
        %450 = vrot.lane.b32.xlu0 %v434, 126
        %v451 = vpop.permute.xlu0 %450
        %452 = vrot.lane.b32.xlu0 %v435, 126
        %v453 = vpop.permute.xlu0 %452
        %454 = vrot.lane.b32.xlu0 %v436, 126
        %v455 = vpop.permute.xlu0 %454
        %456 = vrot.lane.b32.xlu0 %v437, 126
        %v457 = vpop.permute.xlu0 %456
        %458 = vrot.lane.b32.xlu0 %v438, 126
        %v459 = vpop.permute.xlu0 %458
        %460 = vrot.lane.b32.xlu0 %v439, 126
        %v461 = vpop.permute.xlu0 %460
        %462 = vrot.lane.b32.xlu0 %v440, 126
        %v463 = vpop.permute.xlu0 %462
        %464 = vrot.lane.b32.xlu0 %v441, 126
        %v465 = vpop.permute.xlu0 %464
        %v474 = vadd.f32 %v406, %v451
        %v475 = vadd.f32 %v407, %v453
        %v476 = vadd.f32 %v408, %v455
        %v477 = vadd.f32 %v409, %v457
        %v478 = vadd.f32 %v410, %v459
        %v479 = vadd.f32 %v411, %v461
        %v480 = vadd.f32 %v412, %v463
        %v481 = vadd.f32 %v413, %v465
        %v482 = vrot.slane %v318, 1
        %v483 = vrot.slane %v319, 1
        %v484 = vrot.slane %v320, 1
        %v485 = vrot.slane %v321, 1
        %s486 = vtos %v482
        %v487 = vstv %s486
        %s489 = vtos %v483
        %v490 = vstv %s489
        %s492 = vtos %v484
        %v493 = vstv %s492
        %s495 = vtos %v485
        %v496 = vstv %s495
        %v498 = vmul.f32 %v306, %v487
        %v499 = vmul.f32 %v307, %v487
        %v500 = vmul.f32 %v308, %v487
        %v501 = vmul.f32 %v309, %v490
        %v502 = vmul.f32 %v310, %v490
        %v503 = vmul.f32 %v311, %v490
        %v504 = vmul.f32 %v312, %v493
        %v505 = vmul.f32 %v313, %v493
        %v506 = vmul.f32 %v314, %v493
        %v507 = vmul.f32 %v315, %v496
        %v508 = vmul.f32 %v316, %v496
        %v509 = vmul.f32 %v317, %v496
        %vm522 = vcmask 1046528
        %v523 = vrot.slane %v498, 1
        %v524 = vrot.slane %v499, 1
        %v525 = vsel %vm522, %v523, %v524
        %v526 = vrot.slane %v500, 1
        %v527 = vsel %vm522, %v524, %v526
        %v528 = vrot.slane %v501, 1
        %v529 = vrot.slane %v502, 1
        %v530 = vsel %vm522, %v528, %v529
        %v531 = vrot.slane %v503, 1
        %v532 = vsel %vm522, %v529, %v531
        %v533 = vrot.slane %v504, 1
        %v534 = vrot.slane %v505, 1
        %v535 = vsel %vm522, %v533, %v534
        %v536 = vrot.slane %v506, 1
        %v537 = vsel %vm522, %v534, %v536
        %v538 = vrot.slane %v507, 1
        %v539 = vrot.slane %v508, 1
        %v540 = vsel %vm522, %v538, %v539
        %v541 = vrot.slane %v509, 1
        %v542 = vsel %vm522, %v539, %v541
        %v551 = vadd.f32 %v474, %v525
        %v552 = vadd.f32 %v475, %v527
        %v553 = vadd.f32 %v476, %v530
        %v554 = vadd.f32 %v477, %v532
        %v555 = vadd.f32 %v478, %v535
        %v556 = vadd.f32 %v479, %v537
        %v557 = vadd.f32 %v480, %v540
        %v558 = vadd.f32 %v481, %v542
        %559 = vrot.lane.b32.xlu0 %v482, 127
        %v560 = vpop.permute.xlu0 %559
        %561 = vrot.lane.b32.xlu0 %v483, 127
        %v562 = vpop.permute.xlu0 %561
        %563 = vrot.lane.b32.xlu0 %v484, 127
        %v564 = vpop.permute.xlu0 %563
        %565 = vrot.lane.b32.xlu0 %v485, 127
        %v566 = vpop.permute.xlu0 %565
        %s567 = vtos %v560
        %v568 = vstv %s567
        %s570 = vtos %v562
        %v571 = vstv %s570
        %s573 = vtos %v564
        %v574 = vstv %s573
        %s576 = vtos %v566
        %v577 = vstv %s576
        %v579 = vmul.f32 %v306, %v568
        %v580 = vmul.f32 %v307, %v568
        %v581 = vmul.f32 %v308, %v568
        %v582 = vmul.f32 %v309, %v571
        %v583 = vmul.f32 %v310, %v571
        %v584 = vmul.f32 %v311, %v571
        %v585 = vmul.f32 %v312, %v574
        %v586 = vmul.f32 %v313, %v574
        %v587 = vmul.f32 %v314, %v574
        %v588 = vmul.f32 %v315, %v577
        %v589 = vmul.f32 %v316, %v577
        %v590 = vmul.f32 %v317, %v577
        %v603 = vrot.slane %v579, 1
        %v604 = vrot.slane %v580, 1
        %v605 = vsel %vm522, %v603, %v604
        %v606 = vrot.slane %v581, 1
        %v607 = vsel %vm522, %v604, %v606
        %v608 = vrot.slane %v582, 1
        %v609 = vrot.slane %v583, 1
        %v610 = vsel %vm522, %v608, %v609
        %v611 = vrot.slane %v584, 1
        %v612 = vsel %vm522, %v609, %v611
        %v613 = vrot.slane %v585, 1
        %v614 = vrot.slane %v586, 1
        %v615 = vsel %vm522, %v613, %v614
        %v616 = vrot.slane %v587, 1
        %v617 = vsel %vm522, %v614, %v616
        %v618 = vrot.slane %v588, 1
        %v619 = vrot.slane %v589, 1
        %v620 = vsel %vm522, %v618, %v619
        %v621 = vrot.slane %v590, 1
        %v622 = vsel %vm522, %v619, %v621
        %623 = vrot.lane.b32.xlu0 %v605, 127
        %v624 = vpop.permute.xlu0 %623
        %625 = vrot.lane.b32.xlu0 %v607, 127
        %v626 = vpop.permute.xlu0 %625
        %627 = vrot.lane.b32.xlu0 %v610, 127
        %v628 = vpop.permute.xlu0 %627
        %629 = vrot.lane.b32.xlu0 %v612, 127
        %v630 = vpop.permute.xlu0 %629
        %631 = vrot.lane.b32.xlu0 %v615, 127
        %v632 = vpop.permute.xlu0 %631
        %633 = vrot.lane.b32.xlu0 %v617, 127
        %v634 = vpop.permute.xlu0 %633
        %635 = vrot.lane.b32.xlu0 %v620, 127
        %v636 = vpop.permute.xlu0 %635
        %637 = vrot.lane.b32.xlu0 %v622, 127
        %v638 = vpop.permute.xlu0 %637
        %v647 = vadd.f32 %v551, %v624
        %v648 = vadd.f32 %v552, %v626
        %v649 = vadd.f32 %v553, %v628
        %v650 = vadd.f32 %v554, %v630
        %v651 = vadd.f32 %v555, %v632
        %v652 = vadd.f32 %v556, %v634
        %v653 = vadd.f32 %v557, %v636
        %v654 = vadd.f32 %v558, %v638
        %655 = vrot.lane.b32.xlu0 %v482, 126
        %v656 = vpop.permute.xlu0 %655
        %657 = vrot.lane.b32.xlu0 %v483, 126
        %v658 = vpop.permute.xlu0 %657
        %659 = vrot.lane.b32.xlu0 %v484, 126
        %v660 = vpop.permute.xlu0 %659
        %661 = vrot.lane.b32.xlu0 %v485, 126
        %v662 = vpop.permute.xlu0 %661
        %s663 = vtos %v656
        %v664 = vstv %s663
        %s666 = vtos %v658
        %v667 = vstv %s666
        %s669 = vtos %v660
        %v670 = vstv %s669
        %s672 = vtos %v662
        %v673 = vstv %s672
        %v675 = vmul.f32 %v306, %v664
        %v676 = vmul.f32 %v307, %v664
        %v677 = vmul.f32 %v308, %v664
        %v678 = vmul.f32 %v309, %v667
        %v679 = vmul.f32 %v310, %v667
        %v680 = vmul.f32 %v311, %v667
        %v681 = vmul.f32 %v312, %v670
        %v682 = vmul.f32 %v313, %v670
        %v683 = vmul.f32 %v314, %v670
        %v684 = vmul.f32 %v315, %v673
        %v685 = vmul.f32 %v316, %v673
        %v686 = vmul.f32 %v317, %v673
        %v699 = vrot.slane %v675, 1
        %v700 = vrot.slane %v676, 1
        %v701 = vsel %vm522, %v699, %v700
        %v702 = vrot.slane %v677, 1
        %v703 = vsel %vm522, %v700, %v702
        %v704 = vrot.slane %v678, 1
        %v705 = vrot.slane %v679, 1
        %v706 = vsel %vm522, %v704, %v705
        %v707 = vrot.slane %v680, 1
        %v708 = vsel %vm522, %v705, %v707
        %v709 = vrot.slane %v681, 1
        %v710 = vrot.slane %v682, 1
        %v711 = vsel %vm522, %v709, %v710
        %v712 = vrot.slane %v683, 1
        %v713 = vsel %vm522, %v710, %v712
        %v714 = vrot.slane %v684, 1
        %v715 = vrot.slane %v685, 1
        %v716 = vsel %vm522, %v714, %v715
        %v717 = vrot.slane %v686, 1
        %v718 = vsel %vm522, %v715, %v717
        %719 = vrot.lane.b32.xlu0 %v701, 126
        %v720 = vpop.permute.xlu0 %719
        %721 = vrot.lane.b32.xlu0 %v703, 126
        %v722 = vpop.permute.xlu0 %721
        %723 = vrot.lane.b32.xlu0 %v706, 126
        %v724 = vpop.permute.xlu0 %723
        %725 = vrot.lane.b32.xlu0 %v708, 126
        %v726 = vpop.permute.xlu0 %725
        %727 = vrot.lane.b32.xlu0 %v711, 126
        %v728 = vpop.permute.xlu0 %727
        %729 = vrot.lane.b32.xlu0 %v713, 126
        %v730 = vpop.permute.xlu0 %729
        %731 = vrot.lane.b32.xlu0 %v716, 126
        %v732 = vpop.permute.xlu0 %731
        %733 = vrot.lane.b32.xlu0 %v718, 126
        %v734 = vpop.permute.xlu0 %733
        %v743 = vadd.f32 %v647, %v720
        %v744 = vadd.f32 %v648, %v722
        %v745 = vadd.f32 %v649, %v724
        %v746 = vadd.f32 %v650, %v726
        %v747 = vadd.f32 %v651, %v728
        %v748 = vadd.f32 %v652, %v730
        %v749 = vadd.f32 %v653, %v732
        %v750 = vadd.f32 %v654, %v734
        %v751 = vrot.slane %v318, 2
        %v752 = vrot.slane %v319, 2
        %v753 = vrot.slane %v320, 2
        %v754 = vrot.slane %v321, 2
        %s755 = vtos %v751
        %v756 = vstv %s755
        %s758 = vtos %v752
        %v759 = vstv %s758
        %s761 = vtos %v753
        %v762 = vstv %s761
        %s764 = vtos %v754
        %v765 = vstv %s764
        %v767 = vmul.f32 %v306, %v756
        %v768 = vmul.f32 %v307, %v756
        %v769 = vmul.f32 %v308, %v756
        %v770 = vmul.f32 %v309, %v759
        %v771 = vmul.f32 %v310, %v759
        %v772 = vmul.f32 %v311, %v759
        %v773 = vmul.f32 %v312, %v762
        %v774 = vmul.f32 %v313, %v762
        %v775 = vmul.f32 %v314, %v762
        %v776 = vmul.f32 %v315, %v765
        %v777 = vmul.f32 %v316, %v765
        %v778 = vmul.f32 %v317, %v765
        %vm791 = vcmask 1045504
        %v792 = vrot.slane %v767, 2
        %v793 = vrot.slane %v768, 2
        %v794 = vsel %vm791, %v792, %v793
        %v795 = vrot.slane %v769, 2
        %v796 = vsel %vm791, %v793, %v795
        %v797 = vrot.slane %v770, 2
        %v798 = vrot.slane %v771, 2
        %v799 = vsel %vm791, %v797, %v798
        %v800 = vrot.slane %v772, 2
        %v801 = vsel %vm791, %v798, %v800
        %v802 = vrot.slane %v773, 2
        %v803 = vrot.slane %v774, 2
        %v804 = vsel %vm791, %v802, %v803
        %v805 = vrot.slane %v775, 2
        %v806 = vsel %vm791, %v803, %v805
        %v807 = vrot.slane %v776, 2
        %v808 = vrot.slane %v777, 2
        %v809 = vsel %vm791, %v807, %v808
        %v810 = vrot.slane %v778, 2
        %v811 = vsel %vm791, %v808, %v810
        %v820 = vadd.f32 %v743, %v794
        %v821 = vadd.f32 %v744, %v796
        %v822 = vadd.f32 %v745, %v799
        %v823 = vadd.f32 %v746, %v801
        %v824 = vadd.f32 %v747, %v804
        %v825 = vadd.f32 %v748, %v806
        %v826 = vadd.f32 %v749, %v809
        %v827 = vadd.f32 %v750, %v811
        %828 = vrot.lane.b32.xlu0 %v751, 127
        %v829 = vpop.permute.xlu0 %828
        %830 = vrot.lane.b32.xlu0 %v752, 127
        %v831 = vpop.permute.xlu0 %830
        %832 = vrot.lane.b32.xlu0 %v753, 127
        %v833 = vpop.permute.xlu0 %832
        %834 = vrot.lane.b32.xlu0 %v754, 127
        %v835 = vpop.permute.xlu0 %834
        %s836 = vtos %v829
        %v837 = vstv %s836
        %s839 = vtos %v831
        %v840 = vstv %s839
        %s842 = vtos %v833
        %v843 = vstv %s842
        %s845 = vtos %v835
        %v846 = vstv %s845
        %v848 = vmul.f32 %v306, %v837
        %v849 = vmul.f32 %v307, %v837
        %v850 = vmul.f32 %v308, %v837
        %v851 = vmul.f32 %v309, %v840
        %v852 = vmul.f32 %v310, %v840
        %v853 = vmul.f32 %v311, %v840
        %v854 = vmul.f32 %v312, %v843
        %v855 = vmul.f32 %v313, %v843
        %v856 = vmul.f32 %v314, %v843
        %v857 = vmul.f32 %v315, %v846
        %v858 = vmul.f32 %v316, %v846
        %v859 = vmul.f32 %v317, %v846
        %v872 = vrot.slane %v848, 2
        %v873 = vrot.slane %v849, 2
        %v874 = vsel %vm791, %v872, %v873
        %v875 = vrot.slane %v850, 2
        %v876 = vsel %vm791, %v873, %v875
        %v877 = vrot.slane %v851, 2
        %v878 = vrot.slane %v852, 2
        %v879 = vsel %vm791, %v877, %v878
        %v880 = vrot.slane %v853, 2
        %v881 = vsel %vm791, %v878, %v880
        %v882 = vrot.slane %v854, 2
        %v883 = vrot.slane %v855, 2
        %v884 = vsel %vm791, %v882, %v883
        %v885 = vrot.slane %v856, 2
        %v886 = vsel %vm791, %v883, %v885
        %v887 = vrot.slane %v857, 2
        %v888 = vrot.slane %v858, 2
        %v889 = vsel %vm791, %v887, %v888
        %v890 = vrot.slane %v859, 2
        %v891 = vsel %vm791, %v888, %v890
        %892 = vrot.lane.b32.xlu0 %v874, 127
        %v893 = vpop.permute.xlu0 %892
        %894 = vrot.lane.b32.xlu0 %v876, 127
        %v895 = vpop.permute.xlu0 %894
        %896 = vrot.lane.b32.xlu0 %v879, 127
        %v897 = vpop.permute.xlu0 %896
        %898 = vrot.lane.b32.xlu0 %v881, 127
        %v899 = vpop.permute.xlu0 %898
        %900 = vrot.lane.b32.xlu0 %v884, 127
        %v901 = vpop.permute.xlu0 %900
        %902 = vrot.lane.b32.xlu0 %v886, 127
        %v903 = vpop.permute.xlu0 %902
        %904 = vrot.lane.b32.xlu0 %v889, 127
        %v905 = vpop.permute.xlu0 %904
        %906 = vrot.lane.b32.xlu0 %v891, 127
        %v907 = vpop.permute.xlu0 %906
        %v916 = vadd.f32 %v820, %v893
        %v917 = vadd.f32 %v821, %v895
        %v918 = vadd.f32 %v822, %v897
        %v919 = vadd.f32 %v823, %v899
        %v920 = vadd.f32 %v824, %v901
        %v921 = vadd.f32 %v825, %v903
        %v922 = vadd.f32 %v826, %v905
        %v923 = vadd.f32 %v827, %v907
        %924 = vrot.lane.b32.xlu0 %v751, 126
        %v925 = vpop.permute.xlu0 %924
        %926 = vrot.lane.b32.xlu0 %v752, 126
        %v927 = vpop.permute.xlu0 %926
        %928 = vrot.lane.b32.xlu0 %v753, 126
        %v929 = vpop.permute.xlu0 %928
        %930 = vrot.lane.b32.xlu0 %v754, 126
        %v931 = vpop.permute.xlu0 %930
        %s932 = vtos %v925
        %v933 = vstv %s932
        %s935 = vtos %v927
        %v936 = vstv %s935
        %s938 = vtos %v929
        %v939 = vstv %s938
        %s941 = vtos %v931
        %v942 = vstv %s941
        %v944 = vmul.f32 %v306, %v933
        %v945 = vmul.f32 %v307, %v933
        %v946 = vmul.f32 %v308, %v933
        %v947 = vmul.f32 %v309, %v936
        %v948 = vmul.f32 %v310, %v936
        %v949 = vmul.f32 %v311, %v936
        %v950 = vmul.f32 %v312, %v939
        %v951 = vmul.f32 %v313, %v939
        %v952 = vmul.f32 %v314, %v939
        %v953 = vmul.f32 %v315, %v942
        %v954 = vmul.f32 %v316, %v942
        %v955 = vmul.f32 %v317, %v942
        %v968 = vrot.slane %v944, 2
        %v969 = vrot.slane %v945, 2
        %v970 = vsel %vm791, %v968, %v969
        %v971 = vrot.slane %v946, 2
        %v972 = vsel %vm791, %v969, %v971
        %v973 = vrot.slane %v947, 2
        %v974 = vrot.slane %v948, 2
        %v975 = vsel %vm791, %v973, %v974
        %v976 = vrot.slane %v949, 2
        %v977 = vsel %vm791, %v974, %v976
        %v978 = vrot.slane %v950, 2
        %v979 = vrot.slane %v951, 2
        %v980 = vsel %vm791, %v978, %v979
        %v981 = vrot.slane %v952, 2
        %v982 = vsel %vm791, %v979, %v981
        %v983 = vrot.slane %v953, 2
        %v984 = vrot.slane %v954, 2
        %v985 = vsel %vm791, %v983, %v984
        %v986 = vrot.slane %v955, 2
        %v987 = vsel %vm791, %v984, %v986
        %988 = vrot.lane.b32.xlu0 %v970, 126
        %v989 = vpop.permute.xlu0 %988
        %990 = vrot.lane.b32.xlu0 %v972, 126
        %v991 = vpop.permute.xlu0 %990
        %992 = vrot.lane.b32.xlu0 %v975, 126
        %v993 = vpop.permute.xlu0 %992
        %994 = vrot.lane.b32.xlu0 %v977, 126
        %v995 = vpop.permute.xlu0 %994
        %996 = vrot.lane.b32.xlu0 %v980, 126
        %v997 = vpop.permute.xlu0 %996
        %998 = vrot.lane.b32.xlu0 %v982, 126
        %v999 = vpop.permute.xlu0 %998
        %1000 = vrot.lane.b32.xlu0 %v985, 126
        %v1001 = vpop.permute.xlu0 %1000
        %1002 = vrot.lane.b32.xlu0 %v987, 126
        %v1003 = vpop.permute.xlu0 %1002
        %v1012 = vadd.f32 %v916, %v989
        %v1013 = vadd.f32 %v917, %v991
        %v1014 = vadd.f32 %v918, %v993
        %v1015 = vadd.f32 %v919, %v995
        %v1016 = vadd.f32 %v920, %v997
        %v1017 = vadd.f32 %v921, %v999
        %v1018 = vadd.f32 %v922, %v1001
        %v1019 = vadd.f32 %v923, %v1003
        %v1020 = vld [vmem:[%s3] sm:$0x1]
        %v1021 = vld [vmem:[%s3 + $0x1] sm:$0x1]
        %v1022 = vld [vmem:[%s3 + $0x2] sm:$0x1]
        %v1023 = vld [vmem:[%s3 + $0x3] sm:$0x1]
        %v1028 = vlaneseq
        %v1029 = vshrl.u32 %v1028, 7
        %v1030 = vsub.s32 0, %v1029
        %v1031 = vrot.slane %v1020, %v1030
        %v1032 = vlaneseq
        %v1033 = vshrl.u32 %v1032, 7
        %v1034 = vsub.s32 0, %v1033
        %v1035 = vrot.slane %v1021, %v1034
        %v1036 = vlaneseq
        %v1037 = vshrl.u32 %v1036, 7
        %v1038 = vsub.s32 0, %v1037
        %v1039 = vrot.slane %v1022, %v1038
        %v1040 = vlaneseq
        %v1041 = vshrl.u32 %v1040, 7
        %v1042 = vsub.s32 0, %v1041
        %v1043 = vrot.slane %v1023, %v1042
        %1044 = vset.pattern.permute.xlu0 0
        %1045 = vperm.xlu0 %1044, %v1031
        %v1046 = vpop.permute.xlu0 %1045
        %1048 = vset.pattern.permute.xlu0 0
        %1049 = vperm.xlu0 %1048, %v1035
        %v1050 = vpop.permute.xlu0 %1049
        %1052 = vset.pattern.permute.xlu0 0
        %1053 = vperm.xlu0 %1052, %v1039
        %v1054 = vpop.permute.xlu0 %1053
        %1056 = vset.pattern.permute.xlu0 0
        %1057 = vperm.xlu0 %1056, %v1043
        %v1058 = vpop.permute.xlu0 %1057
        %v1060 = vadd.f32 %v1012, %v1046
        %v1061 = vadd.f32 %v1013, %v1046
        %v1062 = vadd.f32 %v1014, %v1050
        %v1063 = vadd.f32 %v1015, %v1050
        %v1064 = vadd.f32 %v1016, %v1054
        %v1065 = vadd.f32 %v1017, %v1054
        %v1066 = vadd.f32 %v1018, %v1058
        %v1067 = vadd.f32 %v1019, %v1058
        %v1068 = vmax.f32 %v1060, 0.0
        %v1069 = vmax.f32 %v1061, 0.0
        %v1070 = vmax.f32 %v1062, 0.0
        %v1071 = vmax.f32 %v1063, 0.0
        %v1072 = vmax.f32 %v1064, 0.0
        %v1073 = vmax.f32 %v1065, 0.0
        %v1074 = vmax.f32 %v1066, 0.0
        %v1075 = vmax.f32 %v1067, 0.0
        %v1076 = vld [vmem:[%s2] sm:$0xf]
        %v1077 = vld [vmem:[%s2 + $0x4] sm:$0xf]
        %v1078 = vld [vmem:[%s2 + $0x8] sm:$0xf]
        %v1079 = vld [vmem:[%s2 + $0xc] sm:$0xf]
        %v1080 = vld [vmem:[%s2 + $0x10] sm:$0xf]
        %v1081 = vld [vmem:[%s2 + $0x14] sm:$0xf]
        %v1082 = vld [vmem:[%s2 + $0x18] sm:$0xf]
        %v1083 = vld [vmem:[%s2 + $0x1c] sm:$0xf]
        %s1085 = vtos %v1076
        %v1086 = vstv %s1085
        %s1089 = vtos %v1077
        %v1090 = vstv %s1089
        %s1093 = vtos %v1078
        %v1094 = vstv %s1093
        %s1097 = vtos %v1079
        %v1098 = vstv %s1097
        %s1101 = vtos %v1080
        %v1102 = vstv %s1101
        %s1105 = vtos %v1081
        %v1106 = vstv %s1105
        %s1109 = vtos %v1082
        %v1110 = vstv %s1109
        %s1113 = vtos %v1083
        %v1114 = vstv %s1113
        %v1116 = vmul.f32 %v1086, %v1068
        %v1117 = vmul.f32 %v1086, %v1069
        %v1118 = vmul.f32 %v1090, %v1068
        %v1119 = vmul.f32 %v1090, %v1069
        %v1120 = vmul.f32 %v1094, %v1068
        %v1121 = vmul.f32 %v1094, %v1069
        %v1122 = vmul.f32 %v1098, %v1068
        %v1123 = vmul.f32 %v1098, %v1069
        %v1124 = vmul.f32 %v1102, %v1068
        %v1125 = vmul.f32 %v1102, %v1069
        %v1126 = vmul.f32 %v1106, %v1068
        %v1127 = vmul.f32 %v1106, %v1069
        %v1128 = vmul.f32 %v1110, %v1068
        %v1129 = vmul.f32 %v1110, %v1069
        %v1130 = vmul.f32 %v1114, %v1068
        %v1131 = vmul.f32 %v1114, %v1069
        %v1132 = vrot.slane %v1076, 1
        %v1133 = vrot.slane %v1077, 1
        %v1134 = vrot.slane %v1078, 1
        %v1135 = vrot.slane %v1079, 1
        %v1136 = vrot.slane %v1080, 1
        %v1137 = vrot.slane %v1081, 1
        %v1138 = vrot.slane %v1082, 1
        %v1139 = vrot.slane %v1083, 1
        %s1140 = vtos %v1132
        %v1141 = vstv %s1140
        %s1143 = vtos %v1133
        %v1144 = vstv %s1143
        %s1146 = vtos %v1134
        %v1147 = vstv %s1146
        %s1149 = vtos %v1135
        %v1150 = vstv %s1149
        %s1152 = vtos %v1136
        %v1153 = vstv %s1152
        %s1155 = vtos %v1137
        %v1156 = vstv %s1155
        %s1158 = vtos %v1138
        %v1159 = vstv %s1158
        %s1161 = vtos %v1139
        %v1162 = vstv %s1161
        %v1164 = vmul.f32 %v1141, %v1070
        %v1165 = vmul.f32 %v1141, %v1071
        %v1166 = vmul.f32 %v1144, %v1070
        %v1167 = vmul.f32 %v1144, %v1071
        %v1168 = vmul.f32 %v1147, %v1070
        %v1169 = vmul.f32 %v1147, %v1071
        %v1170 = vmul.f32 %v1150, %v1070
        %v1171 = vmul.f32 %v1150, %v1071
        %v1172 = vmul.f32 %v1153, %v1070
        %v1173 = vmul.f32 %v1153, %v1071
        %v1174 = vmul.f32 %v1156, %v1070
        %v1175 = vmul.f32 %v1156, %v1071
        %v1176 = vmul.f32 %v1159, %v1070
        %v1177 = vmul.f32 %v1159, %v1071
        %v1178 = vmul.f32 %v1162, %v1070
        %v1179 = vmul.f32 %v1162, %v1071
        %v1180 = vadd.f32 %v1116, %v1164
        %v1181 = vadd.f32 %v1117, %v1165
        %v1182 = vadd.f32 %v1118, %v1166
        %v1183 = vadd.f32 %v1119, %v1167
        %v1184 = vadd.f32 %v1120, %v1168
        %v1185 = vadd.f32 %v1121, %v1169
        %v1186 = vadd.f32 %v1122, %v1170
        %v1187 = vadd.f32 %v1123, %v1171
        %v1188 = vadd.f32 %v1124, %v1172
        %v1189 = vadd.f32 %v1125, %v1173
        %v1190 = vadd.f32 %v1126, %v1174
        %v1191 = vadd.f32 %v1127, %v1175
        %v1192 = vadd.f32 %v1128, %v1176
        %v1193 = vadd.f32 %v1129, %v1177
        %v1194 = vadd.f32 %v1130, %v1178
        %v1195 = vadd.f32 %v1131, %v1179
        %v1196 = vrot.slane %v1076, 2
        %v1197 = vrot.slane %v1077, 2
        %v1198 = vrot.slane %v1078, 2
        %v1199 = vrot.slane %v1079, 2
        %v1200 = vrot.slane %v1080, 2
        %v1201 = vrot.slane %v1081, 2
        %v1202 = vrot.slane %v1082, 2
        %v1203 = vrot.slane %v1083, 2
        %s1204 = vtos %v1196
        %v1205 = vstv %s1204
        %s1207 = vtos %v1197
        %v1208 = vstv %s1207
        %s1210 = vtos %v1198
        %v1211 = vstv %s1210
        %s1213 = vtos %v1199
        %v1214 = vstv %s1213
        %s1216 = vtos %v1200
        %v1217 = vstv %s1216
        %s1219 = vtos %v1201
        %v1220 = vstv %s1219
        %s1222 = vtos %v1202
        %v1223 = vstv %s1222
        %s1225 = vtos %v1203
        %v1226 = vstv %s1225
        %v1228 = vmul.f32 %v1205, %v1072
        %v1229 = vmul.f32 %v1205, %v1073
        %v1230 = vmul.f32 %v1208, %v1072
        %v1231 = vmul.f32 %v1208, %v1073
        %v1232 = vmul.f32 %v1211, %v1072
        %v1233 = vmul.f32 %v1211, %v1073
        %v1234 = vmul.f32 %v1214, %v1072
        %v1235 = vmul.f32 %v1214, %v1073
        %v1236 = vmul.f32 %v1217, %v1072
        %v1237 = vmul.f32 %v1217, %v1073
        %v1238 = vmul.f32 %v1220, %v1072
        %v1239 = vmul.f32 %v1220, %v1073
        %v1240 = vmul.f32 %v1223, %v1072
        %v1241 = vmul.f32 %v1223, %v1073
        %v1242 = vmul.f32 %v1226, %v1072
        %v1243 = vmul.f32 %v1226, %v1073
        %v1244 = vadd.f32 %v1180, %v1228
        %v1245 = vadd.f32 %v1181, %v1229
        %v1246 = vadd.f32 %v1182, %v1230
        %v1247 = vadd.f32 %v1183, %v1231
        %v1248 = vadd.f32 %v1184, %v1232
        %v1249 = vadd.f32 %v1185, %v1233
        %v1250 = vadd.f32 %v1186, %v1234
        %v1251 = vadd.f32 %v1187, %v1235
        %v1252 = vadd.f32 %v1188, %v1236
        %v1253 = vadd.f32 %v1189, %v1237
        %v1254 = vadd.f32 %v1190, %v1238
        %v1255 = vadd.f32 %v1191, %v1239
        %v1256 = vadd.f32 %v1192, %v1240
        %v1257 = vadd.f32 %v1193, %v1241
        %v1258 = vadd.f32 %v1194, %v1242
        %v1259 = vadd.f32 %v1195, %v1243
        %v1260 = vrot.slane %v1076, 3
        %v1261 = vrot.slane %v1077, 3
        %v1262 = vrot.slane %v1078, 3
        %v1263 = vrot.slane %v1079, 3
        %v1264 = vrot.slane %v1080, 3
        %v1265 = vrot.slane %v1081, 3
        %v1266 = vrot.slane %v1082, 3
        %v1267 = vrot.slane %v1083, 3
        %s1268 = vtos %v1260
        %v1269 = vstv %s1268
        %s1271 = vtos %v1261
        %v1272 = vstv %s1271
        %s1274 = vtos %v1262
        %v1275 = vstv %s1274
        %s1277 = vtos %v1263
        %v1278 = vstv %s1277
        %s1280 = vtos %v1264
        %v1281 = vstv %s1280
        %s1283 = vtos %v1265
        %v1284 = vstv %s1283
        %s1286 = vtos %v1266
        %v1287 = vstv %s1286
        %s1289 = vtos %v1267
        %v1290 = vstv %s1289
        %v1292 = vmul.f32 %v1269, %v1074
        %v1293 = vmul.f32 %v1269, %v1075
        %v1294 = vmul.f32 %v1272, %v1074
        %v1295 = vmul.f32 %v1272, %v1075
        %v1296 = vmul.f32 %v1275, %v1074
        %v1297 = vmul.f32 %v1275, %v1075
        %v1298 = vmul.f32 %v1278, %v1074
        %v1299 = vmul.f32 %v1278, %v1075
        %v1300 = vmul.f32 %v1281, %v1074
        %v1301 = vmul.f32 %v1281, %v1075
        %v1302 = vmul.f32 %v1284, %v1074
        %v1303 = vmul.f32 %v1284, %v1075
        %v1304 = vmul.f32 %v1287, %v1074
        %v1305 = vmul.f32 %v1287, %v1075
        %v1306 = vmul.f32 %v1290, %v1074
        %v1307 = vmul.f32 %v1290, %v1075
        %v1308 = vadd.f32 %v1244, %v1292
        %v1309 = vadd.f32 %v1245, %v1293
        %v1310 = vadd.f32 %v1246, %v1294
        %v1311 = vadd.f32 %v1247, %v1295
        %v1312 = vadd.f32 %v1248, %v1296
        %v1313 = vadd.f32 %v1249, %v1297
        %v1314 = vadd.f32 %v1250, %v1298
        %v1315 = vadd.f32 %v1251, %v1299
        %v1316 = vadd.f32 %v1252, %v1300
        %v1317 = vadd.f32 %v1253, %v1301
        %v1318 = vadd.f32 %v1254, %v1302
        %v1319 = vadd.f32 %v1255, %v1303
        %v1320 = vadd.f32 %v1256, %v1304
        %v1321 = vadd.f32 %v1257, %v1305
        %v1322 = vadd.f32 %v1258, %v1306
        %v1323 = vadd.f32 %v1259, %v1307
        %v1324 = vld [vmem:[%s4] sm:$0x1]
        %v1325 = vld [vmem:[%s4 + $0x1] sm:$0x1]
        %v1326 = vld [vmem:[%s4 + $0x2] sm:$0x1]
        %v1327 = vld [vmem:[%s4 + $0x3] sm:$0x1]
        %v1328 = vld [vmem:[%s4 + $0x4] sm:$0x1]
        %v1329 = vld [vmem:[%s4 + $0x5] sm:$0x1]
        %v1330 = vld [vmem:[%s4 + $0x6] sm:$0x1]
        %v1331 = vld [vmem:[%s4 + $0x7] sm:$0x1]
        %v1340 = vlaneseq
        %v1341 = vshrl.u32 %v1340, 7
        %v1342 = vsub.s32 0, %v1341
        %v1343 = vrot.slane %v1324, %v1342
        %v1344 = vlaneseq
        %v1345 = vshrl.u32 %v1344, 7
        %v1346 = vsub.s32 0, %v1345
        %v1347 = vrot.slane %v1325, %v1346
        %v1348 = vlaneseq
        %v1349 = vshrl.u32 %v1348, 7
        %v1350 = vsub.s32 0, %v1349
        %v1351 = vrot.slane %v1326, %v1350
        %v1352 = vlaneseq
        %v1353 = vshrl.u32 %v1352, 7
        %v1354 = vsub.s32 0, %v1353
        %v1355 = vrot.slane %v1327, %v1354
        %v1356 = vlaneseq
        %v1357 = vshrl.u32 %v1356, 7
        %v1358 = vsub.s32 0, %v1357
        %v1359 = vrot.slane %v1328, %v1358
        %v1360 = vlaneseq
        %v1361 = vshrl.u32 %v1360, 7
        %v1362 = vsub.s32 0, %v1361
        %v1363 = vrot.slane %v1329, %v1362
        %v1364 = vlaneseq
        %v1365 = vshrl.u32 %v1364, 7
        %v1366 = vsub.s32 0, %v1365
        %v1367 = vrot.slane %v1330, %v1366
        %v1368 = vlaneseq
        %v1369 = vshrl.u32 %v1368, 7
        %v1370 = vsub.s32 0, %v1369
        %v1371 = vrot.slane %v1331, %v1370
        %1372 = vset.pattern.permute.xlu0 0
        %1373 = vperm.xlu0 %1372, %v1343
        %v1374 = vpop.permute.xlu0 %1373
        %1376 = vset.pattern.permute.xlu0 0
        %1377 = vperm.xlu0 %1376, %v1347
        %v1378 = vpop.permute.xlu0 %1377
        %1380 = vset.pattern.permute.xlu0 0
        %1381 = vperm.xlu0 %1380, %v1351
        %v1382 = vpop.permute.xlu0 %1381
        %1384 = vset.pattern.permute.xlu0 0
        %1385 = vperm.xlu0 %1384, %v1355
        %v1386 = vpop.permute.xlu0 %1385
        %1388 = vset.pattern.permute.xlu0 0
        %1389 = vperm.xlu0 %1388, %v1359
        %v1390 = vpop.permute.xlu0 %1389
        %1392 = vset.pattern.permute.xlu0 0
        %1393 = vperm.xlu0 %1392, %v1363
        %v1394 = vpop.permute.xlu0 %1393
        %1396 = vset.pattern.permute.xlu0 0
        %1397 = vperm.xlu0 %1396, %v1367
        %v1398 = vpop.permute.xlu0 %1397
        %1400 = vset.pattern.permute.xlu0 0
        %1401 = vperm.xlu0 %1400, %v1371
        %v1402 = vpop.permute.xlu0 %1401
        %v1404 = vadd.f32 %v1308, %v1374
        %v1405 = vadd.f32 %v1309, %v1374
        %v1406 = vadd.f32 %v1310, %v1378
        %v1407 = vadd.f32 %v1311, %v1378
        %v1408 = vadd.f32 %v1312, %v1382
        %v1409 = vadd.f32 %v1313, %v1382
        %v1410 = vadd.f32 %v1314, %v1386
        %v1411 = vadd.f32 %v1315, %v1386
        %v1412 = vadd.f32 %v1316, %v1390
        %v1413 = vadd.f32 %v1317, %v1390
        %v1414 = vadd.f32 %v1318, %v1394
        %v1415 = vadd.f32 %v1319, %v1394
        %v1416 = vadd.f32 %v1320, %v1398
        %v1417 = vadd.f32 %v1321, %v1398
        %v1418 = vadd.f32 %v1322, %v1402
        %v1419 = vadd.f32 %v1323, %v1402
        %v1420 = vmax.f32 %v1404, 0.0
        %v1421 = vmax.f32 %v1405, 0.0
        %v1422 = vmax.f32 %v1406, 0.0
        %v1423 = vmax.f32 %v1407, 0.0
        %v1424 = vmax.f32 %v1408, 0.0
        %v1425 = vmax.f32 %v1409, 0.0
        %v1426 = vmax.f32 %v1410, 0.0
        %v1427 = vmax.f32 %v1411, 0.0
        %v1428 = vmax.f32 %v1412, 0.0
        %v1429 = vmax.f32 %v1413, 0.0
        %v1430 = vmax.f32 %v1414, 0.0
        %v1431 = vmax.f32 %v1415, 0.0
        %v1432 = vmax.f32 %v1416, 0.0
        %v1433 = vmax.f32 %v1417, 0.0
        %v1434 = vmax.f32 %v1418, 0.0
        %v1435 = vmax.f32 %v1419, 0.0
        %vm1436 = vcmask 130048
        %1437 = vst.msk [vmem:[%s242] sm:$0xff] %vm1436, %v1420
        %1438 = vst.msk [vmem:[%s242 + $0x8] sm:$0xff] %vm1436, %v1421
        %1439 = vst.msk [vmem:[%s242 + $0x10] sm:$0xff] %vm1436, %v1422
        %1440 = vst.msk [vmem:[%s242 + $0x18] sm:$0xff] %vm1436, %v1423
        %1441 = vst.msk [vmem:[%s242 + $0x20] sm:$0xff] %vm1436, %v1424
        %1442 = vst.msk [vmem:[%s242 + $0x28] sm:$0xff] %vm1436, %v1425
        %1443 = vst.msk [vmem:[%s242 + $0x30] sm:$0xff] %vm1436, %v1426
        %1444 = vst.msk [vmem:[%s242 + $0x38] sm:$0xff] %vm1436, %v1427
        %1445 = vst.msk [vmem:[%s242 + $0x40] sm:$0xff] %vm1436, %v1428
        %1446 = vst.msk [vmem:[%s242 + $0x48] sm:$0xff] %vm1436, %v1429
        %1447 = vst.msk [vmem:[%s242 + $0x50] sm:$0xff] %vm1436, %v1430
        %1448 = vst.msk [vmem:[%s242 + $0x58] sm:$0xff] %vm1436, %v1431
        %1449 = vst.msk [vmem:[%s242 + $0x60] sm:$0xff] %vm1436, %v1432
        %1450 = vst.msk [vmem:[%s242 + $0x68] sm:$0xff] %vm1436, %v1433
        %1451 = vst.msk [vmem:[%s242 + $0x70] sm:$0xff] %vm1436, %v1434
        %1452 = vst.msk [vmem:[%s242 + $0x78] sm:$0xff] %vm1436, %v1435
        %s1453 = sand.u32 %s140, 1
        %s1454 = scalar_lea.sflag [#allocation5], %s1453
        %s1455 = sand.u32 %s140, 1
        %s1456 = smul.addr %s1455, 128
        %s1457 = scalar_lea.vmem [#allocation6], %s1456
        // Predicated region
        $region45: #{tpu_custom_call.1} parent=39 // pred_check
          %p1458 = pneg %p150
        $region46: #{tpu_custom_call.1} parent=39 // pred_check_branch
          %1460 = sbr.rel (%p1458) target = $region48
        $region47: #{tpu_custom_call.1} parent=39 // pred_region
          %s1462 = ssub.s32 2048, 2048
          %1463 = vsyncadd %s1454, %s1462
          %s1464 = smul.addr %s22, 16
          %s1465 = smul.addr %s1464, 128
          %s1466 = scalar_lea.hbm %s5, %s1465
          %s1467 = sshll.u32 %s1457, 4
          %s1468 = int_to_ptr.vmem [resolvable:$true] %s1467
          %1473 = dma.vmem_to_hbm [thread:$0]  %s1468, 2048, %s1466, %s1454, 128, 128, 8
        $region48: #{tpu_custom_call.1} parent=39 // pred_fallthru
          _
      $region40: #{tpu_custom_call.1} parent=5 // pred_fallthru
        _
      %p1474 = scmp.le.s32.totalorder 2, %s17
      // Predicated region
      $region49: #{tpu_custom_call.1} parent=5 // pred_check
        %p1475 = pneg %p1474
      $region50: #{tpu_custom_call.1} parent=5 // pred_check_branch
        %1477 = sbr.rel (%p1475) target = $region52
      $region51: #{tpu_custom_call.1} parent=5 // pred_region
        %s1478 = ssub.s32 %s17, 2
        // Predicated region
        $region53: #{tpu_custom_call.1} parent=51 // pred_check
          %p1479 = pneg %p156
        $region54: #{tpu_custom_call.1} parent=51 // pred_check_branch
          %1481 = sbr.rel (%p1479) target = $region56
        $region55: #{tpu_custom_call.1} parent=51 // pred_region
          %s1482 = sand.u32 %s141, 1
          %s1483 = scalar_lea.sflag [#allocation5], %s1482
          %s1484 = sand.u32 %s141, 1
          %s1485 = smul.addr %s1484, 128
          %s1486 = scalar_lea.vmem [#allocation6], %s1485
          %1487 = dma.done %s1483, 2048
        $region56: #{tpu_custom_call.1} parent=51 // pred_fallthru
          _
      $region52: #{tpu_custom_call.1} parent=5 // pred_fallthru
        _
    $region6: #{tpu_custom_call.1} parent=1 // loop_footer
      %s21 = sadd.s32 1, %s17
    $region7: #{tpu_custom_call.1} parent=1 // loop_footer_branch
      %16 = sbr.rel target = $region3
    $region8: #{tpu_custom_call.1} parent=1 // loop_exit
      _
    %1488 = vsyncpa [#allocation4], 1
    %s1489 = scalar_lea.sflag [#allocation4], 1
    %1490 = vsyncpa %s1489, 1
    %1491 = vsyncpa [#allocation5], 1
    %s1492 = scalar_lea.sflag [#allocation5], 1
    %1493 = vsyncpa %s1492, 1

</llo_original>
